<compile_context>
chip_gen: v7x
topology: tpu7x:2x2x1
jax: 0.10.0
libtpu: 0.0.40
codegen_flags: <defaults>
</compile_context>

<pallas_src>
import functools

import jax
import jax.numpy as jnp
from jax.experimental import pallas as pl
from jax.experimental.pallas import tpu as pltpu

N_BLOCKS = 3
EPS = 1e-5


def _round_up(x, m):
    return (x + m - 1) // m * m


def _score_kernel(x_ref, p_ref, poolw_ref, o_ref, *, n_blocks, W, compute_dtype):
    # x_ref block: (Bt, C, H*W) f32, spatial flattened onto the lane axis.
    # p_ref:       (N_BLOCKS, C, 8) folded per-channel params, C on sublanes.
    # poolw_ref:   (1, H*W) f32: 1/((H-6)*(W-6)) on the valid window, 0 on the border.
    x = x_ref[...].astype(compute_dtype)                 # (Bt, C, HW)
    params = p_ref[...].astype(compute_dtype)            # (NB, C, 8)
    HW = x.shape[2]

    for blk in range(n_blocks):
        p = params[blk]                                  # (C, 8)
        wh0 = p[:, 0:1]; wh1 = p[:, 1:2]; wh2 = p[:, 2:3]; bh = p[:, 3:4]   # (C, 1)
        ww0 = p[:, 4:5]; ww1 = p[:, 5:6]; ww2 = p[:, 6:7]; bw = p[:, 7:8]

        # Depthwise conv along H, kernel (3,1), valid (BN affine folded in).
        # A +r row shift is a +r*W roll on the flattened lane axis; wrapped junk lands
        # in the bottom rows, which the pooling mask discards.
        xr1 = pltpu.roll(x, HW - W, 2)                   # xr1[i] = x[i + W]
        xr2 = pltpu.roll(x, HW - 2 * W, 2)               # xr2[i] = x[i + 2*W]
        y = wh0 * x + wh1 * xr1 + wh2 * xr2 + bh
        y = jnp.maximum(y, 0.0)

        # Depthwise conv along W, kernel (1,3), valid (BN affine folded in).
        yr1 = pltpu.roll(y, HW - 1, 2)                   # yr1[i] = y[i + 1]
        yr2 = pltpu.roll(y, HW - 2, 2)                   # yr2[i] = y[i + 2]
        z = ww0 * y + ww1 * yr1 + ww2 * yr2 + bw
        x = jnp.maximum(z, 0.0)

    # AdaptiveAvgPool2d((1,1)) over the valid (H-6, W-6) window + sigmoid, in f32.
    pooled = jnp.sum(x.astype(jnp.float32) * poolw_ref[...], axis=2)     # (Bt, C)
    o_ref[...] = jax.nn.sigmoid(pooled)[:, None, :].astype(o_ref.dtype)  # (Bt, 1, C)


def _default_compute_dtype():
    """bf16 VALU is native on v6e/v7x; older generations emulate it -> stay in f32."""
    try:
        kind = jax.devices()[0].device_kind.lower()
    except Exception:
        return jnp.float32
    if any(old in kind for old in ("v2", "v3", "v4", "v5")):
        return jnp.float32
    if "v6" in kind or "v7" in kind:
        return jnp.bfloat16
    return jnp.float32


def _pick_batch_tile(N, C, H, W, compute_itemsize, budget_bytes=8 << 20):
    """Largest divisor of N whose (8,128)-padded footprint fits the budget, clamped so
    there are >=2 grid steps whenever possible (feeds v7x's second TensorCore)."""
    c_pad = _round_up(C, 8)
    hw_pad = _round_up(H * W, 128)
    # Per image: 2 pipeline buffers of the f32 input block + ~6 tile-sized live
    # intermediates in the compute dtype (x, y/z, rolled temps, cast copy).
    per_img = c_pad * hw_pad * (4 * 2 + compute_itemsize * 6)
    bt = max(1, min(N, budget_bytes // max(per_img, 1)))
    if N >= 2:
        bt = min(bt, N // 2)
    bt = max(bt, 1)
    while N % bt:
        bt -= 1
    return bt


def _vmem_need_bytes(bt, C, H, W, compute_itemsize):
    """Padded VMEM footprint estimate for one grid step (for vmem_limit_bytes)."""
    c_pad = _round_up(C, 8)
    hw_pad = _round_up(H * W, 128)
    tile = bt * c_pad * hw_pad
    return tile * (4 * 2 + compute_itemsize * 6) + (1 << 20)  # + params/pool/out slack


def score_network(x, packed_params, compute_dtype=None):
    """x: (N, C, H, W) float32; packed_params: (N_BLOCKS, C, 8) folded weights.

    Returns torch-style .squeeze() of the (N, C, 1, 1) sigmoid scores.
    """
    N, C, H, W = x.shape
    assert H > 2 * N_BLOCKS and W > 2 * N_BLOCKS, (
        "spatial dims shrink by 6 across the 3 valid-padded Blocks")
    assert packed_params.shape == (N_BLOCKS, C, 8)

    if compute_dtype is None:
        compute_dtype = _default_compute_dtype()
    itemsize = jnp.dtype(compute_dtype).itemsize
    HW = H * W

    bt = _pick_batch_tile(N, C, H, W, itemsize)

    # Pooling weights: 1/area on the valid (H-6, W-6) window, 0 over the rolled-garbage
    # border (constant-canvas trick: validity applied once, at the pooling step).
    Hv, Wv = H - 2 * N_BLOCKS, W - 2 * N_BLOCKS
    mask = (jnp.arange(H)[:, None] < Hv) & (jnp.arange(W)[None, :] < Wv)
    pool_w = (mask.astype(jnp.float32) / float(Hv * Wv)).reshape(1, HW)

    x_flat = x.reshape(N, C, HW)  # free row-major reshape; H*W rides the lane axis

    kernel = functools.partial(_score_kernel, n_blocks=N_BLOCKS, W=W,
                               compute_dtype=compute_dtype)

    # VALU-bound at realistic sizes (~40+ vector ops per element vs the few ops/byte HBM
    # can feed); the estimate below is advisory for XLA scheduling only.
    cost = pl.CostEstimate(
        flops=int(45 * N * C * H * W),
        transcendentals=int(N * C),
        bytes_accessed=int(x.size * 4 + packed_params.size * 4 + HW * 4 + N * C * 4),
    )

    need = _vmem_need_bytes(bt, C, H, W, itemsize)
    # Only override the scoped-VMEM default when we actually need more than the most
    # conservative default (16 MiB on v5e); cap well under v7x's 64 MiB physical VMEM.
    vmem_limit = int(min(2 * need, 48 << 20)) if need > (16 << 20) else None

    out = pl.pallas_call(
        kernel,
        out_shape=jax.ShapeDtypeStruct((N, 1, C), jnp.float32),
        grid_spec=pltpu.PrefetchScalarGridSpec(
            num_scalar_prefetch=0,
            grid=(N // bt,),
            in_specs=[
                pl.BlockSpec((bt, C, HW), lambda b: (b, 0, 0)),        # activations
                pl.BlockSpec((N_BLOCKS, C, 8), lambda b: (0, 0, 0)),   # folded params
                pl.BlockSpec((1, HW), lambda b: (0, 0)),               # pooling weights
            ],
            out_specs=pl.BlockSpec((bt, 1, C), lambda b: (b, 0, 0)),   # lane-dense scores
        ),
        compiler_params=pltpu.CompilerParams(
            dimension_semantics=("parallel",),
            vmem_limit_bytes=vmem_limit),
        cost_estimate=cost,
    )(x_flat, packed_params, pool_w)
    # torch: x.squeeze() removes all size-1 dims -> (N, C) here (or (C,) if N == 1).
    return jnp.squeeze(out)


# ----------------------------------------------------------------------------
# Parameter construction / packing and a pure-JAX reference for validation.
# ----------------------------------------------------------------------------

def _make_params(key, C):
    """Raw (unfused) params mirroring PyTorch conv + eval-mode BatchNorm."""
    ks = jax.random.split(key, 12)
    bound = 1.0 / jnp.sqrt(3.0)  # PyTorch conv init bound, fan_in = 1*3*1 = 3
    u = lambda k, s: jax.random.uniform(k, s, jnp.float32, -bound, bound)
    n = lambda k, s: jax.random.normal(k, s, jnp.float32)

    wh = u(ks[0], (N_BLOCKS, C, 3))
    bh = u(ks[1], (N_BLOCKS, C))
    ww = u(ks[2], (N_BLOCKS, C, 3))
    bw = u(ks[3], (N_BLOCKS, C))

    g1 = 1.0 + 0.1 * n(ks[4], (N_BLOCKS, C))
    be1 = 0.1 * n(ks[5], (N_BLOCKS, C))
    m1 = 0.1 * n(ks[6], (N_BLOCKS, C))
    v1 = 1.0 + 0.1 * jax.random.uniform(ks[7], (N_BLOCKS, C), jnp.float32)
    g2 = 1.0 + 0.1 * n(ks[8], (N_BLOCKS, C))
    be2 = 0.1 * n(ks[9], (N_BLOCKS, C))
    m2 = 0.1 * n(ks[10], (N_BLOCKS, C))
    v2 = 1.0 + 0.1 * jax.random.uniform(ks[11], (N_BLOCKS, C), jnp.float32)

    s1 = g1 / jnp.sqrt(v1 + EPS)
    t1 = be1 - m1 * s1
    s2 = g2 / jnp.sqrt(v2 + EPS)
    t2 = be2 - m2 * s2
    return (wh, bh, s1, t1, ww, bw, s2, t2)


def _pack_params(raw):
    """Fold conv bias + BN affine into the depthwise weights and pack to (N_BLOCKS, C, 8)."""
    wh, bh, s1, t1, ww, bw, s2, t2 = raw
    whf = wh * s1[..., None]          # (B, C, 3)
    bhf = bh * s1 + t1                # (B, C)
    wwf = ww * s2[..., None]          # (B, C, 3)
    bwf = bw * s2 + t2                # (B, C)
    packed = jnp.concatenate(
        [whf, bhf[..., None], wwf, bwf[..., None]], axis=-1)  # (B, C, 8)
    return packed.astype(jnp.float32)


def _ref_forward(x, raw):
    """Pure-JAX reference of the unfused conv -> BN(eval) -> ReLU math."""
    wh, bh, s1, t1, ww, bw, s2, t2 = raw
    for blk in range(N_BLOCKS):
        H = x.shape[2]
        y = (wh[blk][None, :, 0:1, None] * x[:, :, 0:H - 2, :]
             + wh[blk][None, :, 1:2, None] * x[:, :, 1:H - 1, :]
             + wh[blk][None, :, 2:3, None] * x[:, :, 2:H, :]
             + bh[blk][None, :, None, None])
        y = jnp.maximum(y * s1[blk][None, :, None, None]
                        + t1[blk][None, :, None, None], 0.0)
        W = y.shape[3]
        z = (ww[blk][None, :, 0:1, None] * y[:, :, :, 0:W - 2]
             + ww[blk][None, :, 1:2, None] * y[:, :, :, 1:W - 1]
             + ww[blk][None, :, 2:3, None] * y[:, :, :, 2:W]
             + bw[blk][None, :, None, None])
        x = jnp.maximum(z * s2[blk][None, :, None, None]
                        + t2[blk][None, :, None, None], 0.0)
    pooled = jnp.mean(x, axis=(2, 3))
    return jax.nn.sigmoid(pooled)


if __name__ == "__main__":
    key = jax.random.PRNGKey(0)
    k_param, k_x = jax.random.split(key)

    N, C, H, W = 2, 4, 16, 16  # planes = 4
    raw = _make_params(k_param, C)
    packed = _pack_params(raw)
    x = jax.random.normal(k_x, (N, C, H, W), dtype=jnp.float32)

    compute_dtype = _default_compute_dtype()
    out = jax.block_until_ready(score_network(x, packed, compute_dtype=compute_dtype))

    ref = jnp.squeeze(_ref_forward(x, raw))
    # bf16 conv math on v6e/v7x needs a looser tolerance; f32 path stays tight.
    tol = 1e-5 if jnp.dtype(compute_dtype) == jnp.float32 else 3e-2
    assert out.shape == (N, C), out.shape
    assert jnp.allclose(out, ref, atol=tol, rtol=tol), (out, ref)

    print("KERNEL_OK")
</pallas_src>

<mosaic_0001>
module attributes {stable_mosaic.version = 11 : i64} {
  func.func @_score_kernel(%arg0: i32, %arg1: memref<1x4x256xf32, #tpu.memory_space<vmem>>, %arg2: memref<3x4x8xf32, #tpu.memory_space<vmem>>, %arg3: memref<1x256xf32, #tpu.memory_space<vmem>>, %arg4: memref<1x1x4xf32, #tpu.memory_space<vmem>>) attributes {dimension_semantics = [#tpu.dimension_semantics<parallel>], iteration_bounds = array<i64: 2>, scalar_prefetch = 0 : i64, scratch_operands = 0 : i64, tpu.core_type = #tpu.core_type<tc>, window_params = [{transform_indices = @transform_0, window_bounds = array<i64: 1, 4, 256>}, {pipeline_mode = #tpu.pipeline_mode<synchronous>, transform_indices = @transform_1, window_bounds = array<i64: 3, 4, 8>}, {pipeline_mode = #tpu.pipeline_mode<synchronous>, transform_indices = @transform_2, window_bounds = array<i64: 1, 256>}, {transform_indices = @transform_3, window_bounds = array<i64: 1, 1, 4>}]} {
    %c0 = arith.constant 0 : index
    %c0_0 = arith.constant 0 : index
    %c0_1 = arith.constant 0 : index
    %0 = vector.load %arg1[%c0, %c0_0, %c0_1] : memref<1x4x256xf32, #tpu.memory_space<vmem>>, vector<1x4x256xf32>
    %c0_2 = arith.constant 0 : index
    %c0_3 = arith.constant 0 : index
    %c0_4 = arith.constant 0 : index
    %1 = vector.load %arg2[%c0_2, %c0_3, %c0_4] : memref<3x4x8xf32, #tpu.memory_space<vmem>>, vector<3x4x8xf32>
    %2 = vector.extract_strided_slice %1 {offsets = [0, 0, 0], sizes = [1, 4, 8], strides = [1, 1, 1]} : vector<3x4x8xf32> to vector<1x4x8xf32>
    %3 = vector.shape_cast %2 : vector<1x4x8xf32> to vector<4x8xf32>
    %4 = vector.extract_strided_slice %3 {offsets = [0, 0], sizes = [4, 1], strides = [1, 1]} : vector<4x8xf32> to vector<4x1xf32>
    %5 = vector.extract_strided_slice %3 {offsets = [0, 1], sizes = [4, 1], strides = [1, 1]} : vector<4x8xf32> to vector<4x1xf32>
    %6 = vector.extract_strided_slice %3 {offsets = [0, 2], sizes = [4, 1], strides = [1, 1]} : vector<4x8xf32> to vector<4x1xf32>
    %7 = vector.extract_strided_slice %3 {offsets = [0, 3], sizes = [4, 1], strides = [1, 1]} : vector<4x8xf32> to vector<4x1xf32>
    %8 = vector.extract_strided_slice %3 {offsets = [0, 4], sizes = [4, 1], strides = [1, 1]} : vector<4x8xf32> to vector<4x1xf32>
    %9 = vector.extract_strided_slice %3 {offsets = [0, 5], sizes = [4, 1], strides = [1, 1]} : vector<4x8xf32> to vector<4x1xf32>
    %10 = vector.extract_strided_slice %3 {offsets = [0, 6], sizes = [4, 1], strides = [1, 1]} : vector<4x8xf32> to vector<4x1xf32>
    %11 = vector.extract_strided_slice %3 {offsets = [0, 7], sizes = [4, 1], strides = [1, 1]} : vector<4x8xf32> to vector<4x1xf32>
    %c240_i32 = arith.constant 240 : i32
    %12 = tpu.dynamic_rotate %0 by %c240_i32 dim 2 : vector<1x4x256xf32>, i32 -> vector<1x4x256xf32>
    %c224_i32 = arith.constant 224 : i32
    %13 = tpu.dynamic_rotate %0 by %c224_i32 dim 2 : vector<1x4x256xf32>, i32 -> vector<1x4x256xf32>
    %14 = vector.shape_cast %4 : vector<4x1xf32> to vector<1x4x1xf32>
    %15 = vector.broadcast %14 : vector<1x4x1xf32> to vector<1x4x256xf32>
    %16 = arith.mulf %15, %0 : vector<1x4x256xf32>
    %17 = vector.shape_cast %5 : vector<4x1xf32> to vector<1x4x1xf32>
    %18 = vector.broadcast %17 : vector<1x4x1xf32> to vector<1x4x256xf32>
    %19 = arith.mulf %18, %12 : vector<1x4x256xf32>
    %20 = arith.addf %16, %19 : vector<1x4x256xf32>
    %21 = vector.shape_cast %6 : vector<4x1xf32> to vector<1x4x1xf32>
    %22 = vector.broadcast %21 : vector<1x4x1xf32> to vector<1x4x256xf32>
    %23 = arith.mulf %22, %13 : vector<1x4x256xf32>
    %24 = arith.addf %20, %23 : vector<1x4x256xf32>
    %25 = vector.shape_cast %7 : vector<4x1xf32> to vector<1x4x1xf32>
    %26 = vector.broadcast %25 : vector<1x4x1xf32> to vector<1x4x256xf32>
    %27 = arith.addf %24, %26 : vector<1x4x256xf32>
    %cst = arith.constant 0.000000e+00 : f32
    %28 = vector.broadcast %cst : f32 to vector<1x4x256xf32>
    %29 = arith.maximumf %27, %28 : vector<1x4x256xf32>
    %c255_i32 = arith.constant 255 : i32
    %30 = tpu.dynamic_rotate %29 by %c255_i32 dim 2 : vector<1x4x256xf32>, i32 -> vector<1x4x256xf32>
    %c254_i32 = arith.constant 254 : i32
    %31 = tpu.dynamic_rotate %29 by %c254_i32 dim 2 : vector<1x4x256xf32>, i32 -> vector<1x4x256xf32>
    %32 = vector.shape_cast %8 : vector<4x1xf32> to vector<1x4x1xf32>
    %33 = vector.broadcast %32 : vector<1x4x1xf32> to vector<1x4x256xf32>
    %34 = arith.mulf %33, %29 : vector<1x4x256xf32>
    %35 = vector.shape_cast %9 : vector<4x1xf32> to vector<1x4x1xf32>
    %36 = vector.broadcast %35 : vector<1x4x1xf32> to vector<1x4x256xf32>
    %37 = arith.mulf %36, %30 : vector<1x4x256xf32>
    %38 = arith.addf %34, %37 : vector<1x4x256xf32>
    %39 = vector.shape_cast %10 : vector<4x1xf32> to vector<1x4x1xf32>
    %40 = vector.broadcast %39 : vector<1x4x1xf32> to vector<1x4x256xf32>
    %41 = arith.mulf %40, %31 : vector<1x4x256xf32>
    %42 = arith.addf %38, %41 : vector<1x4x256xf32>
    %43 = vector.shape_cast %11 : vector<4x1xf32> to vector<1x4x1xf32>
    %44 = vector.broadcast %43 : vector<1x4x1xf32> to vector<1x4x256xf32>
    %45 = arith.addf %42, %44 : vector<1x4x256xf32>
    %cst_5 = arith.constant 0.000000e+00 : f32
    %46 = vector.broadcast %cst_5 : f32 to vector<1x4x256xf32>
    %47 = arith.maximumf %45, %46 : vector<1x4x256xf32>
    %48 = vector.extract_strided_slice %1 {offsets = [1, 0, 0], sizes = [1, 4, 8], strides = [1, 1, 1]} : vector<3x4x8xf32> to vector<1x4x8xf32>
    %49 = vector.shape_cast %48 : vector<1x4x8xf32> to vector<4x8xf32>
    %50 = vector.extract_strided_slice %49 {offsets = [0, 0], sizes = [4, 1], strides = [1, 1]} : vector<4x8xf32> to vector<4x1xf32>
    %51 = vector.extract_strided_slice %49 {offsets = [0, 1], sizes = [4, 1], strides = [1, 1]} : vector<4x8xf32> to vector<4x1xf32>
    %52 = vector.extract_strided_slice %49 {offsets = [0, 2], sizes = [4, 1], strides = [1, 1]} : vector<4x8xf32> to vector<4x1xf32>
    %53 = vector.extract_strided_slice %49 {offsets = [0, 3], sizes = [4, 1], strides = [1, 1]} : vector<4x8xf32> to vector<4x1xf32>
    %54 = vector.extract_strided_slice %49 {offsets = [0, 4], sizes = [4, 1], strides = [1, 1]} : vector<4x8xf32> to vector<4x1xf32>
    %55 = vector.extract_strided_slice %49 {offsets = [0, 5], sizes = [4, 1], strides = [1, 1]} : vector<4x8xf32> to vector<4x1xf32>
    %56 = vector.extract_strided_slice %49 {offsets = [0, 6], sizes = [4, 1], strides = [1, 1]} : vector<4x8xf32> to vector<4x1xf32>
    %57 = vector.extract_strided_slice %49 {offsets = [0, 7], sizes = [4, 1], strides = [1, 1]} : vector<4x8xf32> to vector<4x1xf32>
    %c240_i32_6 = arith.constant 240 : i32
    %58 = tpu.dynamic_rotate %47 by %c240_i32_6 dim 2 : vector<1x4x256xf32>, i32 -> vector<1x4x256xf32>
    %c224_i32_7 = arith.constant 224 : i32
    %59 = tpu.dynamic_rotate %47 by %c224_i32_7 dim 2 : vector<1x4x256xf32>, i32 -> vector<1x4x256xf32>
    %60 = vector.shape_cast %50 : vector<4x1xf32> to vector<1x4x1xf32>
    %61 = vector.broadcast %60 : vector<1x4x1xf32> to vector<1x4x256xf32>
    %62 = arith.mulf %61, %47 : vector<1x4x256xf32>
    %63 = vector.shape_cast %51 : vector<4x1xf32> to vector<1x4x1xf32>
    %64 = vector.broadcast %63 : vector<1x4x1xf32> to vector<1x4x256xf32>
    %65 = arith.mulf %64, %58 : vector<1x4x256xf32>
    %66 = arith.addf %62, %65 : vector<1x4x256xf32>
    %67 = vector.shape_cast %52 : vector<4x1xf32> to vector<1x4x1xf32>
    %68 = vector.broadcast %67 : vector<1x4x1xf32> to vector<1x4x256xf32>
    %69 = arith.mulf %68, %59 : vector<1x4x256xf32>
    %70 = arith.addf %66, %69 : vector<1x4x256xf32>
    %71 = vector.shape_cast %53 : vector<4x1xf32> to vector<1x4x1xf32>
    %72 = vector.broadcast %71 : vector<1x4x1xf32> to vector<1x4x256xf32>
    %73 = arith.addf %70, %72 : vector<1x4x256xf32>
    %cst_8 = arith.constant 0.000000e+00 : f32
    %74 = vector.broadcast %cst_8 : f32 to vector<1x4x256xf32>
    %75 = arith.maximumf %73, %74 : vector<1x4x256xf32>
    %c255_i32_9 = arith.constant 255 : i32
    %76 = tpu.dynamic_rotate %75 by %c255_i32_9 dim 2 : vector<1x4x256xf32>, i32 -> vector<1x4x256xf32>
    %c254_i32_10 = arith.constant 254 : i32
    %77 = tpu.dynamic_rotate %75 by %c254_i32_10 dim 2 : vector<1x4x256xf32>, i32 -> vector<1x4x256xf32>
    %78 = vector.shape_cast %54 : vector<4x1xf32> to vector<1x4x1xf32>
    %79 = vector.broadcast %78 : vector<1x4x1xf32> to vector<1x4x256xf32>
    %80 = arith.mulf %79, %75 : vector<1x4x256xf32>
    %81 = vector.shape_cast %55 : vector<4x1xf32> to vector<1x4x1xf32>
    %82 = vector.broadcast %81 : vector<1x4x1xf32> to vector<1x4x256xf32>
    %83 = arith.mulf %82, %76 : vector<1x4x256xf32>
    %84 = arith.addf %80, %83 : vector<1x4x256xf32>
    %85 = vector.shape_cast %56 : vector<4x1xf32> to vector<1x4x1xf32>
    %86 = vector.broadcast %85 : vector<1x4x1xf32> to vector<1x4x256xf32>
    %87 = arith.mulf %86, %77 : vector<1x4x256xf32>
    %88 = arith.addf %84, %87 : vector<1x4x256xf32>
    %89 = vector.shape_cast %57 : vector<4x1xf32> to vector<1x4x1xf32>
    %90 = vector.broadcast %89 : vector<1x4x1xf32> to vector<1x4x256xf32>
    %91 = arith.addf %88, %90 : vector<1x4x256xf32>
    %cst_11 = arith.constant 0.000000e+00 : f32
    %92 = vector.broadcast %cst_11 : f32 to vector<1x4x256xf32>
    %93 = arith.maximumf %91, %92 : vector<1x4x256xf32>
    %94 = vector.extract_strided_slice %1 {offsets = [2, 0, 0], sizes = [1, 4, 8], strides = [1, 1, 1]} : vector<3x4x8xf32> to vector<1x4x8xf32>
    %95 = vector.shape_cast %94 : vector<1x4x8xf32> to vector<4x8xf32>
    %96 = vector.extract_strided_slice %95 {offsets = [0, 0], sizes = [4, 1], strides = [1, 1]} : vector<4x8xf32> to vector<4x1xf32>
    %97 = vector.extract_strided_slice %95 {offsets = [0, 1], sizes = [4, 1], strides = [1, 1]} : vector<4x8xf32> to vector<4x1xf32>
    %98 = vector.extract_strided_slice %95 {offsets = [0, 2], sizes = [4, 1], strides = [1, 1]} : vector<4x8xf32> to vector<4x1xf32>
    %99 = vector.extract_strided_slice %95 {offsets = [0, 3], sizes = [4, 1], strides = [1, 1]} : vector<4x8xf32> to vector<4x1xf32>
    %100 = vector.extract_strided_slice %95 {offsets = [0, 4], sizes = [4, 1], strides = [1, 1]} : vector<4x8xf32> to vector<4x1xf32>
    %101 = vector.extract_strided_slice %95 {offsets = [0, 5], sizes = [4, 1], strides = [1, 1]} : vector<4x8xf32> to vector<4x1xf32>
    %102 = vector.extract_strided_slice %95 {offsets = [0, 6], sizes = [4, 1], strides = [1, 1]} : vector<4x8xf32> to vector<4x1xf32>
    %103 = vector.extract_strided_slice %95 {offsets = [0, 7], sizes = [4, 1], strides = [1, 1]} : vector<4x8xf32> to vector<4x1xf32>
    %c240_i32_12 = arith.constant 240 : i32
    %104 = tpu.dynamic_rotate %93 by %c240_i32_12 dim 2 : vector<1x4x256xf32>, i32 -> vector<1x4x256xf32>
    %c224_i32_13 = arith.constant 224 : i32
    %105 = tpu.dynamic_rotate %93 by %c224_i32_13 dim 2 : vector<1x4x256xf32>, i32 -> vector<1x4x256xf32>
    %106 = vector.shape_cast %96 : vector<4x1xf32> to vector<1x4x1xf32>
    %107 = vector.broadcast %106 : vector<1x4x1xf32> to vector<1x4x256xf32>
    %108 = arith.mulf %107, %93 : vector<1x4x256xf32>
    %109 = vector.shape_cast %97 : vector<4x1xf32> to vector<1x4x1xf32>
    %110 = vector.broadcast %109 : vector<1x4x1xf32> to vector<1x4x256xf32>
    %111 = arith.mulf %110, %104 : vector<1x4x256xf32>
    %112 = arith.addf %108, %111 : vector<1x4x256xf32>
    %113 = vector.shape_cast %98 : vector<4x1xf32> to vector<1x4x1xf32>
    %114 = vector.broadcast %113 : vector<1x4x1xf32> to vector<1x4x256xf32>
    %115 = arith.mulf %114, %105 : vector<1x4x256xf32>
    %116 = arith.addf %112, %115 : vector<1x4x256xf32>
    %117 = vector.shape_cast %99 : vector<4x1xf32> to vector<1x4x1xf32>
    %118 = vector.broadcast %117 : vector<1x4x1xf32> to vector<1x4x256xf32>
    %119 = arith.addf %116, %118 : vector<1x4x256xf32>
    %cst_14 = arith.constant 0.000000e+00 : f32
    %120 = vector.broadcast %cst_14 : f32 to vector<1x4x256xf32>
    %121 = arith.maximumf %119, %120 : vector<1x4x256xf32>
    %c255_i32_15 = arith.constant 255 : i32
    %122 = tpu.dynamic_rotate %121 by %c255_i32_15 dim 2 : vector<1x4x256xf32>, i32 -> vector<1x4x256xf32>
    %c254_i32_16 = arith.constant 254 : i32
    %123 = tpu.dynamic_rotate %121 by %c254_i32_16 dim 2 : vector<1x4x256xf32>, i32 -> vector<1x4x256xf32>
    %124 = vector.shape_cast %100 : vector<4x1xf32> to vector<1x4x1xf32>
    %125 = vector.broadcast %124 : vector<1x4x1xf32> to vector<1x4x256xf32>
    %126 = arith.mulf %125, %121 : vector<1x4x256xf32>
    %127 = vector.shape_cast %101 : vector<4x1xf32> to vector<1x4x1xf32>
    %128 = vector.broadcast %127 : vector<1x4x1xf32> to vector<1x4x256xf32>
    %129 = arith.mulf %128, %122 : vector<1x4x256xf32>
    %130 = arith.addf %126, %129 : vector<1x4x256xf32>
    %131 = vector.shape_cast %102 : vector<4x1xf32> to vector<1x4x1xf32>
    %132 = vector.broadcast %131 : vector<1x4x1xf32> to vector<1x4x256xf32>
    %133 = arith.mulf %132, %123 : vector<1x4x256xf32>
    %134 = arith.addf %130, %133 : vector<1x4x256xf32>
    %135 = vector.shape_cast %103 : vector<4x1xf32> to vector<1x4x1xf32>
    %136 = vector.broadcast %135 : vector<1x4x1xf32> to vector<1x4x256xf32>
    %137 = arith.addf %134, %136 : vector<1x4x256xf32>
    %cst_17 = arith.constant 0.000000e+00 : f32
    %138 = vector.broadcast %cst_17 : f32 to vector<1x4x256xf32>
    %139 = arith.maximumf %137, %138 : vector<1x4x256xf32>
    %c0_18 = arith.constant 0 : index
    %c0_19 = arith.constant 0 : index
    %140 = vector.load %arg3[%c0_18, %c0_19] : memref<1x256xf32, #tpu.memory_space<vmem>>, vector<1x256xf32>
    %141 = vector.shape_cast %140 : vector<1x256xf32> to vector<1x1x256xf32>
    %142 = vector.broadcast %141 : vector<1x1x256xf32> to vector<1x4x256xf32>
    %143 = arith.mulf %139, %142 : vector<1x4x256xf32>
    %cst_20 = arith.constant dense<0.000000e+00> : vector<1x4xf32>
    %144 = vector.multi_reduction <add>, %143, %cst_20 [2] : vector<1x4x256xf32> to vector<1x4xf32>
    %145 = arith.negf %144 : vector<1x4xf32>
    %146 = math.exp %145 : vector<1x4xf32>
    %cst_21 = arith.constant 1.000000e+00 : f32
    %147 = vector.broadcast %cst_21 : f32 to vector<1x4xf32>
    %148 = arith.addf %147, %146 : vector<1x4xf32>
    %149 = arith.divf %147, %148 : vector<1x4xf32>
    %150 = vector.shape_cast %149 : vector<1x4xf32> to vector<1x1x4xf32>
    %c0_22 = arith.constant 0 : index
    %c0_23 = arith.constant 0 : index
    %c0_24 = arith.constant 0 : index
    %151 = vector.load %arg4[%c0_22, %c0_23, %c0_24] : memref<1x1x4xf32, #tpu.memory_space<vmem>>, vector<1x1x4xf32>
    tpu.vector_store %arg4[%c0_22, %c0_23, %c0_24], %150 {strides = array<i32>} : memref<1x1x4xf32, #tpu.memory_space<vmem>>, vector<1x1x4xf32>,
    return
  }
  func.func @transform_0(%arg0: i32) -> (i32, i32, i32) {
    %c0_i32 = arith.constant 0 : i32
    %c0_i32_0 = arith.constant 0 : i32
    %c0_i32_1 = arith.constant 0 : i32
    return %arg0, %c0_i32, %c0_i32_0 : i32, i32, i32
  }
  func.func @transform_1(%arg0: i32) -> (i32, i32, i32) {
    %c0_i32 = arith.constant 0 : i32
    %c0_i32_0 = arith.constant 0 : i32
    %c0_i32_1 = arith.constant 0 : i32
    %c0_i32_2 = arith.constant 0 : i32
    return %c0_i32, %c0_i32_0, %c0_i32_1 : i32, i32, i32
  }
  func.func @transform_2(%arg0: i32) -> (i32, i32) {
    %c0_i32 = arith.constant 0 : i32
    %c0_i32_0 = arith.constant 0 : i32
    %c0_i32_1 = arith.constant 0 : i32
    return %c0_i32, %c0_i32_0 : i32, i32
  }
  func.func @transform_3(%arg0: i32) -> (i32, i32, i32) {
    %c0_i32 = arith.constant 0 : i32
    %c0_i32_0 = arith.constant 0 : i32
    %c0_i32_1 = arith.constant 0 : i32
    return %arg0, %c0_i32, %c0_i32_0 : i32, i32, i32
  }
}

</mosaic_0001>

<llo_original>
// kernel: tpu_custom_call.1
$region0: #{tpu_custom_call.1}
  #allocation0 [shape = 'u32[]', space=smem, size = 0x4, offset = 0x4, fixed_abs, tag = 'smem constant byte address 0x4 - core index']
  #allocation1 [shape = 'u32[144,128]{1,0:T(1,128)}', space=vmem, size = 0x12000, scoped, tag = 'internal scratch']
  %s0 = inlined_call_operand.hbm [shape: f32[2,4,256], index: 0, kind: input, shape index: {}]
  %s1 = inlined_call_operand.hbm [shape: f32[3,4,8], index: 1, kind: input, shape index: {}]
  %s2 = inlined_call_operand.vmem [shape: f32[1,256], index: 2, kind: input, shape index: {}]
  %s3 = inlined_call_operand.hbm [shape: f32[2,1,4], index: 3, kind: output, shape index: {}]
  %s4 = sld [smem:[#allocation0]]
  $region53: #{tpu_custom_call.1} parent=0
    _
  %s6 = ssub.s32 1, %s4
  %s7 = scalar_select 0, %s6, %s4
  $region1: #{tpu_custom_call.1} parent=0
    #allocation2 [shape = 'u8[8192]{0}', space=vmem, size = 0x2000, scoped, tag = 'input window, operand 0']
    #allocation3 [shape = 's32[2]{0}', space=sflag, size = 0x8, scoped, tag = 'scoped memory for tpu_custom_call.1']
    #allocation4 [shape = 's32[2]{0}', space=sflag, size = 0x8, scoped, tag = 'scoped memory for tpu_custom_call.1']
    #allocation5 [shape = 'u8[6144]{0}', space=vmem, size = 0x1800, scoped, tag = 'input window, operand 1, single buffered']
    #allocation6 [shape = 's32[1]{0}', space=sflag, size = 0x4, scoped, tag = 'scoped memory for tpu_custom_call.1']
    #allocation7 [shape = 'u8[1024]{0}', space=vmem, size = 0x400, scoped, tag = 'output window, operand 0']
    %8 = vsyncpa [#allocation3], 0
    %s9 = scalar_lea.sflag [#allocation3], 1
    %10 = vsyncpa %s9, 0
    %11 = vsyncpa [#allocation6], 0
    %12 = vsyncpa [#allocation4], 0
    %s13 = scalar_lea.sflag [#allocation4], 1
    %14 = vsyncpa %s13, 0
    loop: start=0, step=1, limit=4
    $region2: #{tpu_custom_call.1} parent=1 // loop_pre_header
      _
    $region3: #{tpu_custom_call.1} parent=1 // loop_header
      %s16 = sphi 0, %s20
      %p17 = scmp.ge.s32.totalorder %s16, 4
      %s26 = sphi 0, %s28
      %s29 = sphi 0, %s26
      %s30 = sphi 0, %s29
      %s46 = sphi 0, %s30
      %s50 = sphi 0, %s50
      %s52 = sphi 0, %s50
      %s53 = sphi 0, %s52
      %s67 = sphi 0, %s53
      %s71 = sphi 0, %s71
      %s73 = sphi 0, %s71
      %s74 = sphi 0, %s73
      %s88 = sphi 0, %s74
      %s94 = sphi 0, %s96
      %s97 = sphi 0, %s94
      %s98 = sphi 0, %s97
      %s114 = sphi 0, %s98
    $region4: #{tpu_custom_call.1} parent=1 // loop_header_branch
      %19 = sbr.rel (%p17) target = $region8
    $region5: #{tpu_custom_call.1} parent=1 // loop_body
      %s21 = ssub.s32 %s16, 1
      %s22 = ssub.s32 %s16, 2
      %s23 = sadd.s32 %s16, 1
      %s24 = ssub.s32 %s16, %s23
      %p25 = scmp.eq.s32.totalorder %s24, 0
      %s27 = sadd.s32 %s26, 1
      %s28 = scalar_select %p25, %s26, %s27
      %p31 = pneg %p25
      %p32 = scmp.eq.s32.totalorder %s16, 1
      %p33 = por %p31, %p32
      %p34 = scmp.ne.s32.totalorder %s26, %s29
      %p35 = scmp.eq.s32.totalorder %s16, 0
      %p36 = por %p34, %p35
      %p37 = scmp.ne.s32.totalorder %s26, %s29
      %p38 = scmp.eq.s32.totalorder %s21, 1
      %p39 = por %p37, %p38
      %p40 = scmp.ne.s32.totalorder %s29, %s30
      %p41 = scmp.eq.s32.totalorder %s21, 0
      %p42 = por %p40, %p41
      %p43 = scmp.ne.s32.totalorder %s29, %s30
      %p44 = scmp.eq.s32.totalorder %s22, 1
      %p45 = por %p43, %p44
      %p47 = scmp.ne.s32.totalorder %s30, %s46
      %p48 = scmp.eq.s32.totalorder %s22, 0
      %p49 = por %p47, %p48
      %s51 = sadd.s32 %s50, 1
      %p54 = scmp.eq.s32.totalorder %s16, 1
      %p55 = scmp.ne.s32.totalorder %s50, %s52
      %p56 = scmp.eq.s32.totalorder %s16, 0
      %p57 = por %p55, %p56
      %p58 = scmp.ne.s32.totalorder %s50, %s52
      %p59 = scmp.eq.s32.totalorder %s21, 1
      %p60 = por %p58, %p59
      %p61 = scmp.ne.s32.totalorder %s52, %s53
      %p62 = scmp.eq.s32.totalorder %s21, 0
      %p63 = por %p61, %p62
      %p64 = scmp.ne.s32.totalorder %s52, %s53
      %p65 = scmp.eq.s32.totalorder %s22, 1
      %p66 = por %p64, %p65
      %p68 = scmp.ne.s32.totalorder %s53, %s67
      %p69 = scmp.eq.s32.totalorder %s22, 0
      %p70 = por %p68, %p69
      %s72 = sadd.s32 %s71, 1
      %p75 = scmp.eq.s32.totalorder %s16, 1
      %p76 = scmp.ne.s32.totalorder %s71, %s73
      %p77 = scmp.eq.s32.totalorder %s16, 0
      %p78 = por %p76, %p77
      %p79 = scmp.ne.s32.totalorder %s71, %s73
      %p80 = scmp.eq.s32.totalorder %s21, 1
      %p81 = por %p79, %p80
      %p82 = scmp.ne.s32.totalorder %s73, %s74
      %p83 = scmp.eq.s32.totalorder %s21, 0
      %p84 = por %p82, %p83
      %p85 = scmp.ne.s32.totalorder %s73, %s74
      %p86 = scmp.eq.s32.totalorder %s22, 1
      %p87 = por %p85, %p86
      %p89 = scmp.ne.s32.totalorder %s74, %s88
      %p90 = scmp.eq.s32.totalorder %s22, 0
      %p91 = por %p89, %p90
      %s92 = ssub.s32 %s16, %s23
      %p93 = scmp.eq.s32.totalorder %s92, 0
      %s95 = sadd.s32 %s94, 1
      %s96 = scalar_select %p93, %s94, %s95
      %p99 = pneg %p93
      %p100 = scmp.eq.s32.totalorder %s16, 1
      %p101 = por %p99, %p100
      %p102 = scmp.ne.s32.totalorder %s94, %s97
      %p103 = scmp.eq.s32.totalorder %s16, 0
      %p104 = por %p102, %p103
      %p105 = scmp.ne.s32.totalorder %s94, %s97
      %p106 = scmp.eq.s32.totalorder %s21, 1
      %p107 = por %p105, %p106
      %p108 = scmp.ne.s32.totalorder %s97, %s98
      %p109 = scmp.eq.s32.totalorder %s21, 0
      %p110 = por %p108, %p109
      %p111 = scmp.ne.s32.totalorder %s97, %s98
      %p112 = scmp.eq.s32.totalorder %s22, 1
      %p113 = por %p111, %p112
      %p115 = scmp.ne.s32.totalorder %s98, %s114
      %p116 = scmp.eq.s32.totalorder %s22, 0
      %p117 = por %p115, %p116
      %p118 = scmp.le.s32.totalorder 1, %s16
      %p119 = scmp.lt.s32.totalorder %s16, 3
      %p120 = pnand %p118, %p119
      %p121 = pneg %p120
      // Predicated region
      $region9: #{tpu_custom_call.1} parent=5 // pred_check
        _
      $region10: #{tpu_custom_call.1} parent=5 // pred_check_branch
        %123 = sbr.rel (%p120) target = $region12
      $region11: #{tpu_custom_call.1} parent=5 // pred_region
        %s124 = ssub.s32 %s16, 1
        // Predicated region
        $region13: #{tpu_custom_call.1} parent=11 // pred_check
          %p125 = pneg %p63
        $region14: #{tpu_custom_call.1} parent=11 // pred_check_branch
          %127 = sbr.rel (%p125) target = $region16
        $region15: #{tpu_custom_call.1} parent=11 // pred_region
          %s129 = ssub.s32 192, 192
          %130 = vsyncadd [#allocation6], %s129
          %s131 = sshll.u32 [#allocation5], 4
          %s132 = int_to_ptr.vmem [resolvable:$true] %s131
          %137 = dma.hbm_to_vmem [thread:$0]  %s1, 192, %s132, [#allocation6], 64, 64, 4
        $region16: #{tpu_custom_call.1} parent=11 // pred_fallthru
          _
        // Predicated region
        $region17: #{tpu_custom_call.1} parent=11 // pred_check
          %p138 = pneg %p84
        $region18: #{tpu_custom_call.1} parent=11 // pred_check_branch
          %140 = sbr.rel (%p138) target = $region20
        $region19: #{tpu_custom_call.1} parent=11 // pred_region
          _
        $region20: #{tpu_custom_call.1} parent=11 // pred_fallthru
          _
      $region12: #{tpu_custom_call.1} parent=5 // pred_fallthru
        _
      %p141 = scmp.lt.s32.totalorder %s16, 2
      // Predicated region
      $region21: #{tpu_custom_call.1} parent=5 // pred_check
        %p142 = pneg %p141
      $region22: #{tpu_custom_call.1} parent=5 // pred_check_branch
        %144 = sbr.rel (%p142) target = $region24
      $region23: #{tpu_custom_call.1} parent=5 // pred_region
        // Predicated region
        $region25: #{tpu_custom_call.1} parent=23 // pred_check
          %p145 = pneg %p36
        $region26: #{tpu_custom_call.1} parent=23 // pred_check_branch
          %147 = sbr.rel (%p145) target = $region28
        $region27: #{tpu_custom_call.1} parent=23 // pred_region
          %s148 = sand.u32 %s26, 1
          %s149 = scalar_lea.sflag [#allocation3], %s148
          %s150 = sand.u32 %s26, 1
          %s151 = smul.addr %s150, 8
          %s152 = scalar_lea.vmem [#allocation2], %s151
          %s154 = ssub.s32 128, 128
          %155 = vsyncadd %s149, %s154
          %s156 = smul.addr %s16, 2
          %s157 = smul.addr %s156, 64
          %s158 = scalar_lea.hbm %s0, %s157
          %s160 = sshll.u32 %s152, 4
          %s161 = int_to_ptr.vmem [resolvable:$true] %s160
          %163 = dma.hbm_to_vmem [thread:$0]  %s158, 128, %s161, %s149
        $region28: #{tpu_custom_call.1} parent=23 // pred_fallthru
          _
      $region24: #{tpu_custom_call.1} parent=5 // pred_fallthru
        _
      %p164 = scmp.le.s32.totalorder 1, %s16
      %p165 = scmp.lt.s32.totalorder %s16, 3
      %p166 = pnand %p164, %p165
      %p167 = pneg %p166
      // Predicated region
      $region29: #{tpu_custom_call.1} parent=5 // pred_check
        _
      $region30: #{tpu_custom_call.1} parent=5 // pred_check_branch
        %169 = sbr.rel (%p166) target = $region32
      $region31: #{tpu_custom_call.1} parent=5 // pred_region
        %s170 = ssub.s32 %s16, 1
        %s171 = sand.u32 %s29, 1
        %s172 = scalar_lea.sflag [#allocation3], %s171
        %s173 = sand.u32 %s29, 1
        %s174 = smul.addr %s173, 8
        %s175 = scalar_lea.vmem [#allocation2], %s174
        // Predicated region
        $region33: #{tpu_custom_call.1} parent=31 // pred_check
          %p176 = pneg %p42
        $region34: #{tpu_custom_call.1} parent=31 // pred_check_branch
          %178 = sbr.rel (%p176) target = $region36
        $region35: #{tpu_custom_call.1} parent=31 // pred_region
          %179 = dma.done %s172, 128
        $region36: #{tpu_custom_call.1} parent=31 // pred_fallthru
          _
        // Predicated region
        $region37: #{tpu_custom_call.1} parent=31 // pred_check
          %p180 = pneg %p63
        $region38: #{tpu_custom_call.1} parent=31 // pred_check_branch
          %182 = sbr.rel (%p180) target = $region40
        $region39: #{tpu_custom_call.1} parent=31 // pred_region
          %183 = dma.done [#allocation6], 192
        $region40: #{tpu_custom_call.1} parent=31 // pred_fallthru
          _
        %s184 = sand.u32 %s29, 1
        %s185 = scalar_lea.sflag [#allocation3], %s184
        %s186 = sand.u32 %s29, 1
        %s187 = smul.addr %s186, 8
        %s188 = scalar_lea.vmem [#allocation2], %s187
        %p189 = pneg %p42
        %p190 = pneg %p39
        %p191 = pneg %p63
        %p192 = pneg %p60
        %p193 = pneg %p84
        %p194 = pneg %p81
        %p195 = pneg %p110
        %p196 = pneg %p107
        %s197 = sand.u32 %s97, 1
        %s198 = scalar_lea.sflag [#allocation4], %s197
        %s199 = sand.u32 %s97, 1
        %s200 = scalar_lea.vmem [#allocation7], %s199
        %v201 = vld [vmem:[%s175] sm:$0xff]
        %v202 = vld [vmem:[#allocation5] sm:$0xf]
        %v203 = vld [vmem:[#allocation5 + $0x4] sm:$0xf]
        %v204 = vld [vmem:[#allocation5 + $0x8] sm:$0xf]
        %v206 = vcombine.high %v201, %v201
        %208 = vrot.lane.b32.xlu0 %v201, 112
        %v209 = vpop.permute.xlu0 %208
        %210 = vrot.lane.b32.xlu0 %v206, 112
        %v211 = vpop.permute.xlu0 %210
        %v212 = vlaneseq
        %v213 = vand.u32 %v212, 127
        %vm214 = vcmp.lt.s32.totalorder %v213, 112
        %v215 = vsel %vm214, %v209, %v211
        %v216 = vsel %vm214, %v211, %v209
        %217 = vrot.lane.b32.xlu0 %v201, 96
        %v218 = vpop.permute.xlu0 %217
        %219 = vrot.lane.b32.xlu0 %v206, 96
        %v220 = vpop.permute.xlu0 %219
        %vm221 = vcmp.lt.s32.totalorder %v213, 96
        %v222 = vsel %vm221, %v218, %v220
        %v223 = vsel %vm221, %v220, %v218
        %225 = vset.pattern.permute.xlu0 0
        %226 = vperm.xlu0 %225, %v202
        %v227 = vpop.permute.xlu0 %226
        %v229 = vmul.f32 %v227, %v201
        %v230 = vmul.f32 %v227, %v206
        %231 = vset.pattern.permute.xlu0 1
        %232 = vperm.xlu0 %231, %v202
        %v233 = vpop.permute.xlu0 %232
        %v235 = vmul.f32 %v233, %v215
        %v236 = vmul.f32 %v233, %v216
        %v237 = vadd.f32 %v229, %v235
        %v238 = vadd.f32 %v230, %v236
        %239 = vset.pattern.permute.xlu0 2
        %240 = vperm.xlu0 %239, %v202
        %v241 = vpop.permute.xlu0 %240
        %v243 = vmul.f32 %v241, %v222
        %v244 = vmul.f32 %v241, %v223
        %v245 = vadd.f32 %v237, %v243
        %v246 = vadd.f32 %v238, %v244
        %247 = vset.pattern.permute.xlu0 3
        %248 = vperm.xlu0 %247, %v202
        %v249 = vpop.permute.xlu0 %248
        %v251 = vadd.f32 %v245, %v249
        %v252 = vadd.f32 %v246, %v249
        %v253 = vmax.f32 %v251, 0.0
        %v254 = vmax.f32 %v252, 0.0
        %255 = vrot.lane.b32.xlu0 %v253, 127
        %v256 = vpop.permute.xlu0 %255
        %257 = vrot.lane.b32.xlu0 %v254, 127
        %v258 = vpop.permute.xlu0 %257
        %vm259 = vcmp.lt.s32.totalorder %v213, 127
        %v260 = vsel %vm259, %v256, %v258
        %v261 = vsel %vm259, %v258, %v256
        %262 = vrot.lane.b32.xlu0 %v253, 126
        %v263 = vpop.permute.xlu0 %262
        %264 = vrot.lane.b32.xlu0 %v254, 126
        %v265 = vpop.permute.xlu0 %264
        %vm266 = vcmp.lt.s32.totalorder %v213, 126
        %v267 = vsel %vm266, %v263, %v265
        %v268 = vsel %vm266, %v265, %v263
        %269 = vset.pattern.permute.xlu0 4
        %270 = vperm.xlu0 %269, %v202
        %v271 = vpop.permute.xlu0 %270
        %v273 = vmul.f32 %v271, %v253
        %v274 = vmul.f32 %v271, %v254
        %275 = vset.pattern.permute.xlu0 5
        %276 = vperm.xlu0 %275, %v202
        %v277 = vpop.permute.xlu0 %276
        %v279 = vmul.f32 %v277, %v260
        %v280 = vmul.f32 %v277, %v261
        %v281 = vadd.f32 %v273, %v279
        %v282 = vadd.f32 %v274, %v280
        %283 = vset.pattern.permute.xlu0 6
        %284 = vperm.xlu0 %283, %v202
        %v285 = vpop.permute.xlu0 %284
        %v287 = vmul.f32 %v285, %v267
        %v288 = vmul.f32 %v285, %v268
        %v289 = vadd.f32 %v281, %v287
        %v290 = vadd.f32 %v282, %v288
        %291 = vset.pattern.permute.xlu0 7
        %292 = vperm.xlu0 %291, %v202
        %v293 = vpop.permute.xlu0 %292
        %v295 = vadd.f32 %v289, %v293
        %v296 = vadd.f32 %v290, %v293
        %v297 = vmax.f32 %v295, 0.0
        %v298 = vmax.f32 %v296, 0.0
        %299 = vrot.lane.b32.xlu0 %v297, 112
        %v300 = vpop.permute.xlu0 %299
        %301 = vrot.lane.b32.xlu0 %v298, 112
        %v302 = vpop.permute.xlu0 %301
        %v303 = vsel %vm214, %v300, %v302
        %v304 = vsel %vm214, %v302, %v300
        %305 = vrot.lane.b32.xlu0 %v297, 96
        %v306 = vpop.permute.xlu0 %305
        %307 = vrot.lane.b32.xlu0 %v298, 96
        %v308 = vpop.permute.xlu0 %307
        %v309 = vsel %vm221, %v306, %v308
        %v310 = vsel %vm221, %v308, %v306
        %312 = vset.pattern.permute.xlu0 0
        %313 = vperm.xlu0 %312, %v203
        %v314 = vpop.permute.xlu0 %313
        %v316 = vmul.f32 %v314, %v297
        %v317 = vmul.f32 %v314, %v298
        %318 = vset.pattern.permute.xlu0 1
        %319 = vperm.xlu0 %318, %v203
        %v320 = vpop.permute.xlu0 %319
        %v322 = vmul.f32 %v320, %v303
        %v323 = vmul.f32 %v320, %v304
        %v324 = vadd.f32 %v316, %v322
        %v325 = vadd.f32 %v317, %v323
        %326 = vset.pattern.permute.xlu0 2
        %327 = vperm.xlu0 %326, %v203
        %v328 = vpop.permute.xlu0 %327
        %v330 = vmul.f32 %v328, %v309
        %v331 = vmul.f32 %v328, %v310
        %v332 = vadd.f32 %v324, %v330
        %v333 = vadd.f32 %v325, %v331
        %334 = vset.pattern.permute.xlu0 3
        %335 = vperm.xlu0 %334, %v203
        %v336 = vpop.permute.xlu0 %335
        %v338 = vadd.f32 %v332, %v336
        %v339 = vadd.f32 %v333, %v336
        %v340 = vmax.f32 %v338, 0.0
        %v341 = vmax.f32 %v339, 0.0
        %342 = vrot.lane.b32.xlu0 %v340, 127
        %v343 = vpop.permute.xlu0 %342
        %344 = vrot.lane.b32.xlu0 %v341, 127
        %v345 = vpop.permute.xlu0 %344
        %v346 = vsel %vm259, %v343, %v345
        %v347 = vsel %vm259, %v345, %v343
        %348 = vrot.lane.b32.xlu0 %v340, 126
        %v349 = vpop.permute.xlu0 %348
        %350 = vrot.lane.b32.xlu0 %v341, 126
        %v351 = vpop.permute.xlu0 %350
        %v352 = vsel %vm266, %v349, %v351
        %v353 = vsel %vm266, %v351, %v349
        %354 = vset.pattern.permute.xlu0 4
        %355 = vperm.xlu0 %354, %v203
        %v356 = vpop.permute.xlu0 %355
        %v358 = vmul.f32 %v356, %v340
        %v359 = vmul.f32 %v356, %v341
        %360 = vset.pattern.permute.xlu0 5
        %361 = vperm.xlu0 %360, %v203
        %v362 = vpop.permute.xlu0 %361
        %v364 = vmul.f32 %v362, %v346
        %v365 = vmul.f32 %v362, %v347
        %v366 = vadd.f32 %v358, %v364
        %v367 = vadd.f32 %v359, %v365
        %368 = vset.pattern.permute.xlu0 6
        %369 = vperm.xlu0 %368, %v203
        %v370 = vpop.permute.xlu0 %369
        %v372 = vmul.f32 %v370, %v352
        %v373 = vmul.f32 %v370, %v353
        %v374 = vadd.f32 %v366, %v372
        %v375 = vadd.f32 %v367, %v373
        %376 = vset.pattern.permute.xlu0 7
        %377 = vperm.xlu0 %376, %v203
        %v378 = vpop.permute.xlu0 %377
        %v380 = vadd.f32 %v374, %v378
        %v381 = vadd.f32 %v375, %v378
        %v382 = vmax.f32 %v380, 0.0
        %v383 = vmax.f32 %v381, 0.0
        %384 = vrot.lane.b32.xlu0 %v382, 112
        %v385 = vpop.permute.xlu0 %384
        %386 = vrot.lane.b32.xlu0 %v383, 112
        %v387 = vpop.permute.xlu0 %386
        %v388 = vsel %vm214, %v385, %v387
        %v389 = vsel %vm214, %v387, %v385
        %390 = vrot.lane.b32.xlu0 %v382, 96
        %v391 = vpop.permute.xlu0 %390
        %392 = vrot.lane.b32.xlu0 %v383, 96
        %v393 = vpop.permute.xlu0 %392
        %v394 = vsel %vm221, %v391, %v393
        %v395 = vsel %vm221, %v393, %v391
        %397 = vset.pattern.permute.xlu0 0
        %398 = vperm.xlu0 %397, %v204
        %v399 = vpop.permute.xlu0 %398
        %v401 = vmul.f32 %v399, %v382
        %v402 = vmul.f32 %v399, %v383
        %403 = vset.pattern.permute.xlu0 1
        %404 = vperm.xlu0 %403, %v204
        %v405 = vpop.permute.xlu0 %404
        %v407 = vmul.f32 %v405, %v388
        %v408 = vmul.f32 %v405, %v389
        %v409 = vadd.f32 %v401, %v407
        %v410 = vadd.f32 %v402, %v408
        %411 = vset.pattern.permute.xlu0 2
        %412 = vperm.xlu0 %411, %v204
        %v413 = vpop.permute.xlu0 %412
        %v415 = vmul.f32 %v413, %v394
        %v416 = vmul.f32 %v413, %v395
        %v417 = vadd.f32 %v409, %v415
        %v418 = vadd.f32 %v410, %v416
        %419 = vset.pattern.permute.xlu0 3
        %420 = vperm.xlu0 %419, %v204
        %v421 = vpop.permute.xlu0 %420
        %v423 = vadd.f32 %v417, %v421
        %v424 = vadd.f32 %v418, %v421
        %v425 = vmax.f32 %v423, 0.0
        %v426 = vmax.f32 %v424, 0.0
        %427 = vrot.lane.b32.xlu0 %v425, 127
        %v428 = vpop.permute.xlu0 %427
        %429 = vrot.lane.b32.xlu0 %v426, 127
        %v430 = vpop.permute.xlu0 %429
        %v431 = vsel %vm259, %v428, %v430
        %v432 = vsel %vm259, %v430, %v428
        %433 = vrot.lane.b32.xlu0 %v425, 126
        %v434 = vpop.permute.xlu0 %433
        %435 = vrot.lane.b32.xlu0 %v426, 126
        %v436 = vpop.permute.xlu0 %435
        %v437 = vsel %vm266, %v434, %v436
        %v438 = vsel %vm266, %v436, %v434
        %439 = vset.pattern.permute.xlu0 4
        %440 = vperm.xlu0 %439, %v204
        %v441 = vpop.permute.xlu0 %440
        %v443 = vmul.f32 %v441, %v425
        %v444 = vmul.f32 %v441, %v426
        %445 = vset.pattern.permute.xlu0 5
        %446 = vperm.xlu0 %445, %v204
        %v447 = vpop.permute.xlu0 %446
        %v449 = vmul.f32 %v447, %v431
        %v450 = vmul.f32 %v447, %v432
        %v451 = vadd.f32 %v443, %v449
        %v452 = vadd.f32 %v444, %v450
        %453 = vset.pattern.permute.xlu0 6
        %454 = vperm.xlu0 %453, %v204
        %v455 = vpop.permute.xlu0 %454
        %v457 = vmul.f32 %v455, %v437
        %v458 = vmul.f32 %v455, %v438
        %v459 = vadd.f32 %v451, %v457
        %v460 = vadd.f32 %v452, %v458
        %461 = vset.pattern.permute.xlu0 7
        %462 = vperm.xlu0 %461, %v204
        %v463 = vpop.permute.xlu0 %462
        %v465 = vadd.f32 %v459, %v463
        %v466 = vadd.f32 %v460, %v463
        %v467 = vmax.f32 %v465, 0.0
        %v468 = vmax.f32 %v466, 0.0
        %v469 = vld [vmem:[%s2] sm:$0x3]
        %v471 = vlaneseq
        %v472 = vshrl.u32 %v471, 7
        %v473 = vsub.s32 0, %v472
        %v474 = vrot.slane %v469, %v473
        %v475 = vlaneseq
        %v476 = vshrl.u32 %v475, 7
        %v477 = vsub.s32 1, %v476
        %v478 = vrot.slane %v469, %v477
        %v481 = vmul.f32 %v467, %v474
        %v482 = vmul.f32 %v468, %v478
        %vm483 = vcmask 1043456
        %v484 = vsel %vm483, %v481, 0.0
        %v485 = vsel %vm483, %v482, 0.0
        %v486 = vadd.f32 %v484, %v485
        %487 = vadd.xlane.f32.xlu0 %v486
        %v488 = vpop.xlane.xlu0 %487
        %v489 = vxor.u32 %v488, 2147483648
        %v490 = vmul.f32 %v489, 1.442695
        %v491 = vpow.pop %v490
        %v492 = vadd.f32 %v491, 1.0
        %v493 = vrcp.pop %v492
        %v494 = vmul.f32 1.0, %v493
        %v496 = vlaneseq
        %v497 = vshrl.u32 %v496, 7
        %v498 = vsub.s32 %v213, %v497
        %v499 = vrot.slane %v494, %v498
        %vm501 = vcmask 24576
        %502 = vst.msk [vmem:[%s200] sm:$0x1] %vm501, %v499
        %s503 = sand.u32 %s97, 1
        %s504 = scalar_lea.sflag [#allocation4], %s503
        %s505 = sand.u32 %s97, 1
        %s506 = scalar_lea.vmem [#allocation7], %s505
        // Predicated region
        $region41: #{tpu_custom_call.1} parent=31 // pred_check
          %p507 = pneg %p107
        $region42: #{tpu_custom_call.1} parent=31 // pred_check_branch
          %509 = sbr.rel (%p507) target = $region44
        $region43: #{tpu_custom_call.1} parent=31 // pred_region
          %s511 = ssub.s32 16, 16
          %512 = vsyncadd %s504, %s511
          %s513 = smul.addr %s21, 16
          %s514 = scalar_lea.hbm %s3, %s513
          %s516 = sshll.u32 %s506, 4
          %s517 = int_to_ptr.vmem [resolvable:$true] %s516
          %519 = dma.vmem_to_hbm [thread:$0]  %s517, 16, %s514, %s504
        $region44: #{tpu_custom_call.1} parent=31 // pred_fallthru
          _
      $region32: #{tpu_custom_call.1} parent=5 // pred_fallthru
        _
      %p520 = scmp.le.s32.totalorder 2, %s16
      // Predicated region
      $region45: #{tpu_custom_call.1} parent=5 // pred_check
        %p521 = pneg %p520
      $region46: #{tpu_custom_call.1} parent=5 // pred_check_branch
        %523 = sbr.rel (%p521) target = $region48
      $region47: #{tpu_custom_call.1} parent=5 // pred_region
        %s524 = ssub.s32 %s16, 2
        // Predicated region
        $region49: #{tpu_custom_call.1} parent=47 // pred_check
          %p525 = pneg %p113
        $region50: #{tpu_custom_call.1} parent=47 // pred_check_branch
          %527 = sbr.rel (%p525) target = $region52
        $region51: #{tpu_custom_call.1} parent=47 // pred_region
          %s528 = sand.u32 %s98, 1
          %s529 = scalar_lea.sflag [#allocation4], %s528
          %s530 = sand.u32 %s98, 1
          %s531 = scalar_lea.vmem [#allocation7], %s530
          %532 = dma.done %s529, 16
        $region52: #{tpu_custom_call.1} parent=47 // pred_fallthru
          _
      $region48: #{tpu_custom_call.1} parent=5 // pred_fallthru
        _
    $region6: #{tpu_custom_call.1} parent=1 // loop_footer
      %s20 = sadd.s32 1, %s16
    $region7: #{tpu_custom_call.1} parent=1 // loop_footer_branch
      %15 = sbr.rel target = $region3
    $region8: #{tpu_custom_call.1} parent=1 // loop_exit
      _
    %533 = vsyncpa [#allocation3], 1
    %s534 = scalar_lea.sflag [#allocation3], 1
    %535 = vsyncpa %s534, 1
    %536 = vsyncpa [#allocation6], 1
    %537 = vsyncpa [#allocation4], 1
    %s538 = scalar_lea.sflag [#allocation4], 1
    %539 = vsyncpa %s538, 1

</llo_original>
